<compile_context>
chip_gen: v7x
topology: tpu7x:2x2x1
jax: 0.10.0
libtpu: 0.0.40
codegen_flags: <defaults>
</compile_context>

<pallas_src>
import functools

import jax
import jax.numpy as jnp
from jax import lax
from jax.experimental import pallas as pl
from jax.experimental.pallas import tpu as pltpu

MARGIN = 1.0
PAIRWISE_EPS = 1e-6     # matches torch F.pairwise_distance default eps
LOG_CLAMP = -100.0      # torch BCELoss clamps log terms at -100

_SUBLANE = 8
_LANE = 128
_MAX_TILE = 2048        # rows; review-recommended ceiling for F~128


def _round_up(x, m):
    return ((x + m - 1) // m) * m


def _tpu_info():
    try:
        return pltpu.get_tpu_info()
    except Exception:
        return None


def _vmem_capacity_bytes():
    info = _tpu_info()
    if info is not None:
        for name in ("vmem_capacity_bytes", "vmem_bytes", "vmem_size_bytes"):
            v = getattr(info, name, None)
            if v is not None:
                try:
                    v = int(v)
                except (TypeError, ValueError):
                    continue
                if v > 0:
                    return v
    return 64 * 2**20            # conservative: v7x per-TC VMEM


def _num_tensorcores():
    info = _tpu_info()
    if info is not None:
        for name in ("num_tensorcores", "tensorcore_count", "num_cores",
                     "cores_per_chip", "core_count"):
            v = getattr(info, name, None)
            if v is not None:
                try:
                    v = int(v)
                except (TypeError, ValueError):
                    continue
                if v > 0:
                    return v
    return 1                     # safe default: single-TC serial grid


def _loss_kernel(batch, has_tail, d_lat,
                 p1_ref, x1_ref, p2_ref, x2_ref, zpack_ref,
                 bce_ref, con_ref):
    """One batch tile: fused BCE(p1,x1)+BCE(p2,x2) sums + contrastive sums.

    bce_ref: (8, F) f32 output block, constant across the reduction axis ->
             acts as a vreg-shaped accumulator (VALU adds only per tile).
    con_ref: (8, 1) f32 output block, same idea for the per-row contrastive
             terms.
    """
    c = pl.program_id(0)            # core-partition index
    t = pl.program_id(1)            # batch-tile index (reduction axis)
    n_t = pl.num_programs(1)
    tb, feat = p1_ref.shape

    @pl.when(t == 0)
    def _init():
        bce_ref[...] = jnp.zeros_like(bce_ref)
        con_ref[...] = jnp.zeros_like(con_ref)

    # Row-validity mask, emitted only when the batch is not tile-divisible.
    if has_tail:
        tile_idx = c * n_t + t
        rows = tile_idx * tb + lax.broadcasted_iota(jnp.int32, (tb, 1), 0)
        valid = rows < batch                               # (tb, 1) bool

    # ---- fused BCE(p1,x1) + BCE(p2,x2), accumulated as SUMS ---------------
    def bce_sum_terms(p_ref, x_ref):
        p = p_ref[...].astype(jnp.float32)
        x = x_ref[...].astype(jnp.float32)
        logp = jnp.maximum(jnp.log(p), LOG_CLAMP)
        log1mp = jnp.maximum(jnp.log(1.0 - p), LOG_CLAMP)
        # x*logp + (1-x)*log1mp  ==  log1mp + x*(logp - log1mp)  (fewer VALU)
        return log1mp + x * (logp - log1mp)

    bce_elem = bce_sum_terms(p1_ref, x1_ref) + bce_sum_terms(p2_ref, x2_ref)
    if has_tail:
        bce_elem = jnp.where(valid, bce_elem, 0.0)         # select, not mul
    # Fold rows with vreg-wise VALU adds; cross-lane reduce deferred to wrapper.
    bce_ref[...] = bce_ref[...] - jnp.sum(
        bce_elem.reshape(tb // _SUBLANE, _SUBLANE, feat), axis=0)

    # ---- contrastive term on packed latents, accumulated as a SUM ---------
    z1 = zpack_ref[:, :d_lat].astype(jnp.float32)
    z2 = zpack_ref[:, d_lat:2 * d_lat].astype(jnp.float32)
    lbl = zpack_ref[:, 2 * d_lat:2 * d_lat + 1].astype(jnp.float32)  # (tb,1)

    diff = (z1 - z2) + PAIRWISE_EPS
    d2 = jnp.sum(diff * diff, axis=1, keepdims=True)       # (tb, 1)
    d = jnp.sqrt(d2)
    hinge = jnp.maximum(MARGIN - d, 0.0)
    per_row = lbl * d2 + (1.0 - lbl) * (hinge * hinge)
    if has_tail:
        per_row = jnp.where(valid, per_row, 0.0)
    con_ref[...] = con_ref[...] + jnp.sum(
        per_row.reshape(tb // _SUBLANE, _SUBLANE, 1), axis=0)


def loss_fn(z1, z2, p1, p2, x1, x2, label, *, tile_batch=None):
    """Pallas wrapper. p1/p2/x1/x2: (B,F); z1/z2: (B,D); label: (B,) 0/1."""
    B, F = p1.shape
    D = z1.shape[1]

    # --- pack z1 | z2 | label into one lane-dense slab (one DMA per tile) --
    zdt = z1.dtype
    ZW = max(_LANE, _round_up(2 * D + 1, _LANE))
    parts = [z1, z2.astype(zdt), label.reshape(B, 1).astype(zdt)]
    pad = ZW - (2 * D + 1)
    if pad:
        parts.append(jnp.zeros((B, pad), zdt))
    zpack = jnp.concatenate(parts, axis=1)                 # (B, ZW)

    # --- adaptive tile sizing from queried VMEM capacity --------------------
    p_item = jnp.dtype(p1.dtype).itemsize
    z_item = jnp.dtype(zdt).itemsize
    vmem_cap = _vmem_capacity_bytes()
    per_row_bytes = 2 * (4 * F * p_item + ZW * z_item)     # double-buffered

    if tile_batch is None:
        budget = int(0.35 * vmem_cap)
        tile_batch = min(budget // max(per_row_bytes, 1), _MAX_TILE,
                         _round_up(B, 16))
    tile_batch = max(16, _round_up(int(tile_batch), 16))   # bf16-safe sublanes

    num_tiles = pl.cdiv(B, tile_batch)
    has_tail = (num_tiles * tile_batch) != B

    # --- accurate scoped-VMEM request: 1.5x footprint, <= 75% of capacity ---
    out_bytes = 2 * 2 * (_SUBLANE * F + _SUBLANE) * 4
    work_bytes = 8 * tile_batch * F * 4                    # f32 intermediates
    footprint = tile_batch * per_row_bytes + work_bytes + out_bytes
    vmem_limit = int(min(0.75 * vmem_cap,
                         max(8 * 2**20, (3 * footprint) // 2)))

    kernel = functools.partial(_loss_kernel, B, has_tail, D)

    def run(ncores, semantics):
        tiles_per_core = num_tiles // ncores
        row_map = lambda c, t: (c * tiles_per_core + t, 0)
        out_map = lambda c, t: (c, 0, 0)
        grid_spec = pltpu.PrefetchScalarGridSpec(
            num_scalar_prefetch=0,
            grid=(ncores, tiles_per_core),
            in_specs=[
                pl.BlockSpec((tile_batch, F), row_map),    # p1
                pl.BlockSpec((tile_batch, F), row_map),    # x1
                pl.BlockSpec((tile_batch, F), row_map),    # p2
                pl.BlockSpec((tile_batch, F), row_map),    # x2
                pl.BlockSpec((tile_batch, ZW), row_map),   # z1|z2|label slab
            ],
            out_specs=[
                pl.BlockSpec((None, _SUBLANE, F), out_map),   # BCE partials
                pl.BlockSpec((None, _SUBLANE, 1), out_map),   # contrastive
            ],
        )
        return pl.pallas_call(
            kernel,
            out_shape=(
                jax.ShapeDtypeStruct((ncores, _SUBLANE, F), jnp.float32),
                jax.ShapeDtypeStruct((ncores, _SUBLANE, 1), jnp.float32),
            ),
            grid_spec=grid_spec,
            compiler_params=pltpu.CompilerParams(
                dimension_semantics=semantics,
                vmem_limit_bytes=vmem_limit),
        )(p1, x1, p2, x2, zpack)

    ncores = _num_tensorcores()
    if ncores > 1 and num_tiles % ncores != 0:
        ncores = 1
    if ncores > 1:
        try:
            bce_part, con_part = run(
                ncores, (pltpu.CORE_PARALLEL, pltpu.ARBITRARY))
        except Exception:
            # Safe fallback if the multi-core split fails to lower on this chip.
            bce_part, con_part = run(1, ("arbitrary", "arbitrary"))
    else:
        bce_part, con_part = run(1, ("arbitrary", "arbitrary"))

    # Single cross-lane/core reduce + division by static counts, once.
    bce_sum = jnp.sum(bce_part)
    con_sum = jnp.sum(con_part)
    return bce_sum / (B * F) + con_sum / B


def loss_ref(z1, z2, p1, p2, x1, x2, label):
    """Plain-JAX reference for sanity checking."""
    def bce(p, x):
        lp = jnp.maximum(jnp.log(p), LOG_CLAMP)
        l1p = jnp.maximum(jnp.log(1.0 - p), LOG_CLAMP)
        return -jnp.mean(x * lp + (1.0 - x) * l1p)
    diff = z1 - z2 + PAIRWISE_EPS
    d2 = jnp.sum(diff * diff, axis=1)
    d = jnp.sqrt(d2)
    lbl = label.astype(jnp.float32)
    c = jnp.mean(lbl * d2 + (1.0 - lbl) * jnp.maximum(MARGIN - d, 0.0) ** 2)
    return bce(p1, x1) + bce(p2, x2) + c


if __name__ == "__main__":
    key = jax.random.PRNGKey(0)
    # Small demo shapes: B not a multiple of the tile exercises tail masking,
    # and 4 batch tiles exercise the pipeline (and the core split if present).
    B, F, D = 56, 128, 16
    TB = 16

    k = jax.random.split(key, 7)
    p1 = jax.nn.sigmoid(jax.random.normal(k[0], (B, F), jnp.float32))
    p2 = jax.nn.sigmoid(jax.random.normal(k[1], (B, F), jnp.float32))
    x1 = jax.random.uniform(k[2], (B, F), jnp.float32)
    x2 = jax.random.uniform(k[3], (B, F), jnp.float32)
    z1 = jax.random.normal(k[4], (B, D), jnp.float32)
    z2 = jax.random.normal(k[5], (B, D), jnp.float32)
    label = (jax.random.uniform(k[6], (B,)) > 0.5).astype(jnp.float32)

    ref = jax.block_until_ready(loss_ref(z1, z2, p1, p2, x1, x2, label))

    # Small tiles: multiple grid steps + masked tail tile.
    out = jax.block_until_ready(
        loss_fn(z1, z2, p1, p2, x1, x2, label, tile_batch=TB))
    assert jnp.allclose(out, ref, rtol=1e-5, atol=1e-5), (out, ref)

    # Adaptive (VMEM-derived) tile size path.
    out_auto = jax.block_until_ready(loss_fn(z1, z2, p1, p2, x1, x2, label))
    assert jnp.allclose(out_auto, ref, rtol=1e-5, atol=1e-5), (out_auto, ref)

    # bfloat16 inputs (halved HBM traffic); kernel upcasts to f32 internally.
    bf = lambda a: a.astype(jnp.bfloat16)
    up = lambda a: a.astype(jnp.bfloat16).astype(jnp.float32)
    out_bf = jax.block_until_ready(
        loss_fn(bf(z1), bf(z2), bf(p1), bf(p2), bf(x1), bf(x2), label,
                tile_batch=TB))
    ref_bf = jax.block_until_ready(
        loss_ref(up(z1), up(z2), up(p1), up(p2), up(x1), up(x2), label))
    assert jnp.allclose(out_bf, ref_bf, rtol=1e-4, atol=1e-4), (out_bf, ref_bf)

    print("KERNEL_OK")
</pallas_src>

<mosaic_0001>
module attributes {stable_mosaic.version = 11 : i64} {
  func.func @_loss_kernel(%arg0: i32, %arg1: i32, %arg2: memref<16x128xf32, #tpu.memory_space<vmem>>, %arg3: memref<16x128xf32, #tpu.memory_space<vmem>>, %arg4: memref<16x128xf32, #tpu.memory_space<vmem>>, %arg5: memref<16x128xf32, #tpu.memory_space<vmem>>, %arg6: memref<16x128xf32, #tpu.memory_space<vmem>>, %arg7: memref<1x8x128xf32, #tpu.memory_space<vmem>>, %arg8: memref<1x8x1xf32, #tpu.memory_space<vmem>>) attributes {dimension_semantics = [#tpu.dimension_semantics<arbitrary>, #tpu.dimension_semantics<arbitrary>], iteration_bounds = array<i64: 1, 4>, scalar_prefetch = 0 : i64, scratch_operands = 0 : i64, tpu.core_type = #tpu.core_type<tc>, window_params = [{transform_indices = @transform_0, window_bounds = array<i64: 16, 128>}, {transform_indices = @transform_1, window_bounds = array<i64: 16, 128>}, {transform_indices = @transform_2, window_bounds = array<i64: 16, 128>}, {transform_indices = @transform_3, window_bounds = array<i64: 16, 128>}, {transform_indices = @transform_4, window_bounds = array<i64: 16, 128>}, {transform_indices = @transform_5, window_bounds = array<i64: 1, 8, 128>}, {transform_indices = @transform_6, window_bounds = array<i64: 1, 8, 1>}]} {
    %c0_i32 = arith.constant 0 : i32
    %0 = arith.cmpi eq, %arg1, %c0_i32 : i32
    %1 = arith.extui %0 : i1 to i32
    %c0_i32_0 = arith.constant 0 : i32
    %2 = arith.cmpi ne, %1, %c0_i32_0 : i32
    scf.if %2 {
      %cst_38 = arith.constant 0.000000e+00 : f32
      %80 = vector.broadcast %cst_38 : f32 to vector<8x128xf32>
      %c0_39 = arith.constant 0 : index
      %c0_40 = arith.constant 0 : index
      %c0_41 = arith.constant 0 : index
      %81 = vector.load %arg7[%c0_39, %c0_40, %c0_41] : memref<1x8x128xf32, #tpu.memory_space<vmem>>, vector<1x8x128xf32>
      %82 = vector.shape_cast %81 : vector<1x8x128xf32> to vector<8x128xf32>
      %83 = vector.shape_cast %80 : vector<8x128xf32> to vector<1x8x128xf32>
      tpu.vector_store %arg7[%c0_39, %c0_40, %c0_41], %83 {strides = array<i32>} : memref<1x8x128xf32, #tpu.memory_space<vmem>>, vector<1x8x128xf32>,
      %cst_42 = arith.constant 0.000000e+00 : f32
      %84 = vector.broadcast %cst_42 : f32 to vector<8x1xf32>
      %c0_43 = arith.constant 0 : index
      %c0_44 = arith.constant 0 : index
      %c0_45 = arith.constant 0 : index
      %85 = vector.load %arg8[%c0_43, %c0_44, %c0_45] : memref<1x8x1xf32, #tpu.memory_space<vmem>>, vector<1x8x1xf32>
      %86 = vector.shape_cast %85 : vector<1x8x1xf32> to vector<8x1xf32>
      %87 = vector.shape_cast %84 : vector<8x1xf32> to vector<1x8x1xf32>
      tpu.vector_store %arg8[%c0_43, %c0_44, %c0_45], %87 {strides = array<i32>} : memref<1x8x1xf32, #tpu.memory_space<vmem>>, vector<1x8x1xf32>,
    } else {
    }
    %c4_i32 = arith.constant 4 : i32
    %3 = arith.muli %arg0, %c4_i32 : i32
    %4 = arith.addi %3, %arg1 : i32
    %c16_i32 = arith.constant 16 : i32
    %5 = arith.muli %4, %c16_i32 : i32
    %6 = tpu.iota {dimensions = array<i32: 0>} : vector<16x1xi32>
    %7 = vector.broadcast %5 : i32 to vector<16x1xi32>
    %8 = arith.addi %7, %6 : vector<16x1xi32>
    %c56_i32 = arith.constant 56 : i32
    %9 = vector.broadcast %c56_i32 : i32 to vector<16x1xi32>
    %10 = arith.cmpi slt, %8, %9 : vector<16x1xi32>
    %c0 = arith.constant 0 : index
    %c0_1 = arith.constant 0 : index
    %11 = vector.load %arg2[%c0, %c0_1] : memref<16x128xf32, #tpu.memory_space<vmem>>, vector<16x128xf32>
    %c0_2 = arith.constant 0 : index
    %c0_3 = arith.constant 0 : index
    %12 = vector.load %arg3[%c0_2, %c0_3] : memref<16x128xf32, #tpu.memory_space<vmem>>, vector<16x128xf32>
    %13 = math.log %11 : vector<16x128xf32>
    %cst = arith.constant -1.000000e+02 : f32
    %14 = vector.broadcast %cst : f32 to vector<16x128xf32>
    %15 = arith.maximumf %13, %14 : vector<16x128xf32>
    %cst_4 = arith.constant 1.000000e+00 : f32
    %16 = vector.broadcast %cst_4 : f32 to vector<16x128xf32>
    %17 = arith.subf %16, %11 : vector<16x128xf32>
    %18 = math.log %17 : vector<16x128xf32>
    %cst_5 = arith.constant -1.000000e+02 : f32
    %19 = vector.broadcast %cst_5 : f32 to vector<16x128xf32>
    %20 = arith.maximumf %18, %19 : vector<16x128xf32>
    %21 = arith.subf %15, %20 : vector<16x128xf32>
    %22 = arith.mulf %12, %21 : vector<16x128xf32>
    %23 = arith.addf %20, %22 : vector<16x128xf32>
    %c0_6 = arith.constant 0 : index
    %c0_7 = arith.constant 0 : index
    %24 = vector.load %arg4[%c0_6, %c0_7] : memref<16x128xf32, #tpu.memory_space<vmem>>, vector<16x128xf32>
    %c0_8 = arith.constant 0 : index
    %c0_9 = arith.constant 0 : index
    %25 = vector.load %arg5[%c0_8, %c0_9] : memref<16x128xf32, #tpu.memory_space<vmem>>, vector<16x128xf32>
    %26 = math.log %24 : vector<16x128xf32>
    %cst_10 = arith.constant -1.000000e+02 : f32
    %27 = vector.broadcast %cst_10 : f32 to vector<16x128xf32>
    %28 = arith.maximumf %26, %27 : vector<16x128xf32>
    %cst_11 = arith.constant 1.000000e+00 : f32
    %29 = vector.broadcast %cst_11 : f32 to vector<16x128xf32>
    %30 = arith.subf %29, %24 : vector<16x128xf32>
    %31 = math.log %30 : vector<16x128xf32>
    %cst_12 = arith.constant -1.000000e+02 : f32
    %32 = vector.broadcast %cst_12 : f32 to vector<16x128xf32>
    %33 = arith.maximumf %31, %32 : vector<16x128xf32>
    %34 = arith.subf %28, %33 : vector<16x128xf32>
    %35 = arith.mulf %25, %34 : vector<16x128xf32>
    %36 = arith.addf %33, %35 : vector<16x128xf32>
    %37 = arith.addf %23, %36 : vector<16x128xf32>
    %cst_13 = arith.constant 0.000000e+00 : f32
    %38 = vector.shape_cast %10 : vector<16x1xi1> to vector<16x1xi1>
    %39 = vector.broadcast %38 : vector<16x1xi1> to vector<16x128xi1>
    %40 = vector.broadcast %cst_13 : f32 to vector<16x128xf32>
    %41 = arith.select %39, %37, %40 : vector<16x128xi1>, vector<16x128xf32>
    %c0_14 = arith.constant 0 : index
    %c0_15 = arith.constant 0 : index
    %c0_16 = arith.constant 0 : index
    %42 = vector.load %arg7[%c0_14, %c0_15, %c0_16] : memref<1x8x128xf32, #tpu.memory_space<vmem>>, vector<1x8x128xf32>
    %43 = vector.shape_cast %42 : vector<1x8x128xf32> to vector<8x128xf32>
    %44 = vector.shape_cast %41 : vector<16x128xf32> to vector<2x8x128xf32>
    %cst_17 = arith.constant dense<0.000000e+00> : vector<8x128xf32>
    %45 = vector.multi_reduction <add>, %44, %cst_17 [0] : vector<2x8x128xf32> to vector<8x128xf32>
    %46 = arith.subf %43, %45 : vector<8x128xf32>
    %c0_18 = arith.constant 0 : index
    %c0_19 = arith.constant 0 : index
    %c0_20 = arith.constant 0 : index
    %47 = vector.load %arg7[%c0_18, %c0_19, %c0_20] : memref<1x8x128xf32, #tpu.memory_space<vmem>>, vector<1x8x128xf32>
    %48 = vector.shape_cast %47 : vector<1x8x128xf32> to vector<8x128xf32>
    %49 = vector.shape_cast %46 : vector<8x128xf32> to vector<1x8x128xf32>
    tpu.vector_store %arg7[%c0_18, %c0_19, %c0_20], %49 {strides = array<i32>} : memref<1x8x128xf32, #tpu.memory_space<vmem>>, vector<1x8x128xf32>,
    %c0_21 = arith.constant 0 : index
    %c0_22 = arith.constant 0 : index
    %50 = vector.load %arg6[%c0_21, %c0_22] : memref<16x128xf32, #tpu.memory_space<vmem>>, vector<16x16xf32>
    %c0_23 = arith.constant 0 : index
    %c16 = arith.constant 16 : index
    %51 = vector.load %arg6[%c0_23, %c16] : memref<16x128xf32, #tpu.memory_space<vmem>>, vector<16x16xf32>
    %c0_24 = arith.constant 0 : index
    %c32 = arith.constant 32 : index
    %52 = vector.load %arg6[%c0_24, %c32] : memref<16x128xf32, #tpu.memory_space<vmem>>, vector<16x1xf32>
    %53 = arith.subf %50, %51 : vector<16x16xf32>
    %cst_25 = arith.constant 9.99999997E-7 : f32
    %54 = vector.broadcast %cst_25 : f32 to vector<16x16xf32>
    %55 = arith.addf %53, %54 : vector<16x16xf32>
    %56 = arith.mulf %55, %55 : vector<16x16xf32>
    %cst_26 = arith.constant dense<0.000000e+00> : vector<16xf32>
    %57 = vector.multi_reduction <add>, %56, %cst_26 [1] : vector<16x16xf32> to vector<16xf32>
    %58 = vector.shape_cast %57 : vector<16xf32> to vector<16x1xf32>
    %59 = math.sqrt %58 : vector<16x1xf32>
    %cst_27 = arith.constant 1.000000e+00 : f32
    %60 = vector.broadcast %cst_27 : f32 to vector<16x1xf32>
    %61 = arith.subf %60, %59 : vector<16x1xf32>
    %cst_28 = arith.constant 0.000000e+00 : f32
    %62 = vector.broadcast %cst_28 : f32 to vector<16x1xf32>
    %63 = arith.maximumf %61, %62 : vector<16x1xf32>
    %64 = arith.mulf %52, %58 : vector<16x1xf32>
    %cst_29 = arith.constant 1.000000e+00 : f32
    %65 = vector.broadcast %cst_29 : f32 to vector<16x1xf32>
    %66 = arith.subf %65, %52 : vector<16x1xf32>
    %67 = arith.mulf %63, %63 : vector<16x1xf32>
    %68 = arith.mulf %66, %67 : vector<16x1xf32>
    %69 = arith.addf %64, %68 : vector<16x1xf32>
    %cst_30 = arith.constant 0.000000e+00 : f32
    %70 = vector.broadcast %cst_30 : f32 to vector<16x1xf32>
    %71 = arith.select %10, %69, %70 : vector<16x1xi1>, vector<16x1xf32>
    %c0_31 = arith.constant 0 : index
    %c0_32 = arith.constant 0 : index
    %c0_33 = arith.constant 0 : index
    %72 = vector.load %arg8[%c0_31, %c0_32, %c0_33] : memref<1x8x1xf32, #tpu.memory_space<vmem>>, vector<1x8x1xf32>
    %73 = vector.shape_cast %72 : vector<1x8x1xf32> to vector<8x1xf32>
    %74 = vector.shape_cast %71 : vector<16x1xf32> to vector<2x8x1xf32>
    %cst_34 = arith.constant dense<0.000000e+00> : vector<8x1xf32>
    %75 = vector.multi_reduction <add>, %74, %cst_34 [0] : vector<2x8x1xf32> to vector<8x1xf32>
    %76 = arith.addf %73, %75 : vector<8x1xf32>
    %c0_35 = arith.constant 0 : index
    %c0_36 = arith.constant 0 : index
    %c0_37 = arith.constant 0 : index
    %77 = vector.load %arg8[%c0_35, %c0_36, %c0_37] : memref<1x8x1xf32, #tpu.memory_space<vmem>>, vector<1x8x1xf32>
    %78 = vector.shape_cast %77 : vector<1x8x1xf32> to vector<8x1xf32>
    %79 = vector.shape_cast %76 : vector<8x1xf32> to vector<1x8x1xf32>
    tpu.vector_store %arg8[%c0_35, %c0_36, %c0_37], %79 {strides = array<i32>} : memref<1x8x1xf32, #tpu.memory_space<vmem>>, vector<1x8x1xf32>,
    return
  }
  func.func @transform_0(%arg0: i32, %arg1: i32) -> (i32, i32) {
    %c4_i32 = arith.constant 4 : i32
    %0 = arith.muli %arg0, %c4_i32 : i32
    %1 = arith.addi %0, %arg1 : i32
    %c0_i32 = arith.constant 0 : i32
    %c0_i32_0 = arith.constant 0 : i32
    return %1, %c0_i32 : i32, i32
  }
  func.func @transform_1(%arg0: i32, %arg1: i32) -> (i32, i32) {
    %c4_i32 = arith.constant 4 : i32
    %0 = arith.muli %arg0, %c4_i32 : i32
    %1 = arith.addi %0, %arg1 : i32
    %c0_i32 = arith.constant 0 : i32
    %c0_i32_0 = arith.constant 0 : i32
    return %1, %c0_i32 : i32, i32
  }
  func.func @transform_2(%arg0: i32, %arg1: i32) -> (i32, i32) {
    %c4_i32 = arith.constant 4 : i32
    %0 = arith.muli %arg0, %c4_i32 : i32
    %1 = arith.addi %0, %arg1 : i32
    %c0_i32 = arith.constant 0 : i32
    %c0_i32_0 = arith.constant 0 : i32
    return %1, %c0_i32 : i32, i32
  }
  func.func @transform_3(%arg0: i32, %arg1: i32) -> (i32, i32) {
    %c4_i32 = arith.constant 4 : i32
    %0 = arith.muli %arg0, %c4_i32 : i32
    %1 = arith.addi %0, %arg1 : i32
    %c0_i32 = arith.constant 0 : i32
    %c0_i32_0 = arith.constant 0 : i32
    return %1, %c0_i32 : i32, i32
  }
  func.func @transform_4(%arg0: i32, %arg1: i32) -> (i32, i32) {
    %c4_i32 = arith.constant 4 : i32
    %0 = arith.muli %arg0, %c4_i32 : i32
    %1 = arith.addi %0, %arg1 : i32
    %c0_i32 = arith.constant 0 : i32
    %c0_i32_0 = arith.constant 0 : i32
    return %1, %c0_i32 : i32, i32
  }
  func.func @transform_5(%arg0: i32, %arg1: i32) -> (i32, i32, i32) {
    %c0_i32 = arith.constant 0 : i32
    %c0_i32_0 = arith.constant 0 : i32
    %c0_i32_1 = arith.constant 0 : i32
    return %arg0, %c0_i32, %c0_i32_0 : i32, i32, i32
  }
  func.func @transform_6(%arg0: i32, %arg1: i32) -> (i32, i32, i32) {
    %c0_i32 = arith.constant 0 : i32
    %c0_i32_0 = arith.constant 0 : i32
    %c0_i32_1 = arith.constant 0 : i32
    return %arg0, %c0_i32, %c0_i32_0 : i32, i32, i32
  }
}

</mosaic_0001>

<llo_original>
// kernel: tpu_custom_call.1
$region0: #{tpu_custom_call.1}
  #allocation0 [shape = 'u32[]', space=smem, size = 0x4, offset = 0x4, fixed_abs, tag = 'smem constant byte address 0x4 - core index']
  #allocation1 [shape = 'u32[144,128]{1,0:T(1,128)}', space=vmem, size = 0x12000, scoped, tag = 'internal scratch']
  %s0 = inlined_call_operand.hbm [shape: f32[56,128], index: 0, kind: input, shape index: {}]
  %s1 = inlined_call_operand.hbm [shape: f32[56,128], index: 1, kind: input, shape index: {}]
  %s2 = inlined_call_operand.hbm [shape: f32[56,128], index: 2, kind: input, shape index: {}]
  %s3 = inlined_call_operand.hbm [shape: f32[56,128], index: 3, kind: input, shape index: {}]
  %s4 = inlined_call_operand.hbm [shape: f32[56,128], index: 4, kind: input, shape index: {}]
  %s5 = inlined_call_operand.hbm [shape: f32[1,8,128], index: 5, kind: output, shape index: {0}]
  %s6 = inlined_call_operand.vmem [shape: f32[1,8,1], index: 6, kind: output, shape index: {1}]
  %7 = xla_tuple %s5, %s6
  %s8 = sld [smem:[#allocation0]]
  $region85: #{tpu_custom_call.1} parent=0
    _
  %s10 = ssub.s32 1, %s8
  %s11 = scalar_select 0, %s10, %s8
  $region1: #{tpu_custom_call.1} parent=0
    #allocation2 [shape = 'u8[16384]{0}', space=vmem, size = 0x4000, scoped, tag = 'input window, operand 0']
    #allocation3 [shape = 's32[2]{0}', space=sflag, size = 0x8, scoped, tag = 'scoped memory for tpu_custom_call.1']
    #allocation4 [shape = 's32[2]{0}', space=sflag, size = 0x8, scoped, tag = 'scoped memory for tpu_custom_call.1']
    #allocation5 [shape = 'u8[16384]{0}', space=vmem, size = 0x4000, scoped, tag = 'input window, operand 1']
    #allocation6 [shape = 's32[2]{0}', space=sflag, size = 0x8, scoped, tag = 'scoped memory for tpu_custom_call.1']
    #allocation7 [shape = 'u8[16384]{0}', space=vmem, size = 0x4000, scoped, tag = 'input window, operand 2']
    #allocation8 [shape = 'u8[16384]{0}', space=vmem, size = 0x4000, scoped, tag = 'input window, operand 3']
    #allocation9 [shape = 's32[2]{0}', space=sflag, size = 0x8, scoped, tag = 'scoped memory for tpu_custom_call.1']
    #allocation10 [shape = 'u8[16384]{0}', space=vmem, size = 0x4000, scoped, tag = 'input window, operand 4']
    #allocation11 [shape = 'u8[4096]{0}', space=vmem, size = 0x1000, scoped, tag = 'output window, operand 0, single buffered']
    %12 = vsyncpa [#allocation3], 0
    %s13 = scalar_lea.sflag [#allocation3], 1
    %14 = vsyncpa %s13, 0
    %15 = vsyncpa [#allocation6], 0
    %s16 = scalar_lea.sflag [#allocation6], 1
    %17 = vsyncpa %s16, 0
    %18 = vsyncpa [#allocation9], 0
    %s19 = scalar_lea.sflag [#allocation9], 1
    %20 = vsyncpa %s19, 0
    %21 = vsyncpa [#allocation4], 0
    loop: start=0, step=1, limit=6
    $region2: #{tpu_custom_call.1} parent=1 // loop_pre_header
      _
    $region3: #{tpu_custom_call.1} parent=1 // loop_header
      %s23 = sphi 0, %s27
      %p24 = scmp.ge.s32.totalorder %s23, 6
      %s30 = sphi 0, %s42
      %s31 = sphi 0, %s38
      %s32 = sphi 0, %s30
      %s33 = sphi 0, %s31
      %s34 = sphi 0, %s32
      %s35 = sphi 0, %s33
      %s49 = sphi 0, %s51
      %s52 = sphi 0, %s49
      %s53 = sphi 0, %s52
      %s69 = sphi 0, %s53
      %s79 = sphi 0, %s81
      %s82 = sphi 0, %s79
      %s83 = sphi 0, %s82
      %s99 = sphi 0, %s83
      %s109 = sphi 0, %s111
      %s112 = sphi 0, %s109
      %s113 = sphi 0, %s112
      %s129 = sphi 0, %s113
      %s139 = sphi 0, %s141
      %s142 = sphi 0, %s139
      %s143 = sphi 0, %s142
      %s159 = sphi 0, %s143
      %s169 = sphi 0, %s171
      %s172 = sphi 0, %s169
      %s173 = sphi 0, %s172
      %s189 = sphi 0, %s173
      %s195 = sphi 0, %s197
      %s198 = sphi 0, %s195
      %s199 = sphi 0, %s198
      %s215 = sphi 0, %s199
      %s221 = sphi 0, %s223
      %s224 = sphi 0, %s221
      %s225 = sphi 0, %s224
      %s241 = sphi 0, %s225
    $region4: #{tpu_custom_call.1} parent=1 // loop_header_branch
      %26 = sbr.rel (%p24) target = $region8
    $region5: #{tpu_custom_call.1} parent=1 // loop_body
      %s28 = ssub.s32 %s23, 1
      %s29 = ssub.s32 %s23, 2
      %s36 = sadd.s32 1, %s31
      %p37 = scmp.ge.s32.totalorder %s36, 4
      %s38 = scalar_select %p37, 0, %s36
      %s39 = sadd.s32 1, %s30
      %s40 = scalar_select %p37, %s39, %s30
      %p41 = scmp.ge.s32.totalorder %s40, 1
      %s42 = scalar_select %p41, 0, %s40
      %s43 = smul.u32 %s30, 4
      %s44 = sadd.s32 %s43, %s31
      %s45 = smul.u32 %s42, 4
      %s46 = sadd.s32 %s45, %s38
      %s47 = ssub.s32 %s44, %s46
      %p48 = scmp.eq.s32.totalorder %s47, 0
      %s50 = sadd.s32 %s49, 1
      %s51 = scalar_select %p48, %s49, %s50
      %p54 = pneg %p48
      %p55 = scmp.eq.s32.totalorder %s23, 3
      %p56 = por %p54, %p55
      %p57 = scmp.ne.s32.totalorder %s49, %s52
      %p58 = scmp.eq.s32.totalorder %s23, 0
      %p59 = por %p57, %p58
      %p60 = scmp.ne.s32.totalorder %s49, %s52
      %p61 = scmp.eq.s32.totalorder %s28, 3
      %p62 = por %p60, %p61
      %p63 = scmp.ne.s32.totalorder %s52, %s53
      %p64 = scmp.eq.s32.totalorder %s28, 0
      %p65 = por %p63, %p64
      %p66 = scmp.ne.s32.totalorder %s52, %s53
      %p67 = scmp.eq.s32.totalorder %s29, 3
      %p68 = por %p66, %p67
      %p70 = scmp.ne.s32.totalorder %s53, %s69
      %p71 = scmp.eq.s32.totalorder %s29, 0
      %p72 = por %p70, %p71
      %s73 = smul.u32 %s30, 4
      %s74 = sadd.s32 %s73, %s31
      %s75 = smul.u32 %s42, 4
      %s76 = sadd.s32 %s75, %s38
      %s77 = ssub.s32 %s74, %s76
      %p78 = scmp.eq.s32.totalorder %s77, 0
      %s80 = sadd.s32 %s79, 1
      %s81 = scalar_select %p78, %s79, %s80
      %p84 = pneg %p78
      %p85 = scmp.eq.s32.totalorder %s23, 3
      %p86 = por %p84, %p85
      %p87 = scmp.ne.s32.totalorder %s79, %s82
      %p88 = scmp.eq.s32.totalorder %s23, 0
      %p89 = por %p87, %p88
      %p90 = scmp.ne.s32.totalorder %s79, %s82
      %p91 = scmp.eq.s32.totalorder %s28, 3
      %p92 = por %p90, %p91
      %p93 = scmp.ne.s32.totalorder %s82, %s83
      %p94 = scmp.eq.s32.totalorder %s28, 0
      %p95 = por %p93, %p94
      %p96 = scmp.ne.s32.totalorder %s82, %s83
      %p97 = scmp.eq.s32.totalorder %s29, 3
      %p98 = por %p96, %p97
      %p100 = scmp.ne.s32.totalorder %s83, %s99
      %p101 = scmp.eq.s32.totalorder %s29, 0
      %p102 = por %p100, %p101
      %s103 = smul.u32 %s30, 4
      %s104 = sadd.s32 %s103, %s31
      %s105 = smul.u32 %s42, 4
      %s106 = sadd.s32 %s105, %s38
      %s107 = ssub.s32 %s104, %s106
      %p108 = scmp.eq.s32.totalorder %s107, 0
      %s110 = sadd.s32 %s109, 1
      %s111 = scalar_select %p108, %s109, %s110
      %p114 = pneg %p108
      %p115 = scmp.eq.s32.totalorder %s23, 3
      %p116 = por %p114, %p115
      %p117 = scmp.ne.s32.totalorder %s109, %s112
      %p118 = scmp.eq.s32.totalorder %s23, 0
      %p119 = por %p117, %p118
      %p120 = scmp.ne.s32.totalorder %s109, %s112
      %p121 = scmp.eq.s32.totalorder %s28, 3
      %p122 = por %p120, %p121
      %p123 = scmp.ne.s32.totalorder %s112, %s113
      %p124 = scmp.eq.s32.totalorder %s28, 0
      %p125 = por %p123, %p124
      %p126 = scmp.ne.s32.totalorder %s112, %s113
      %p127 = scmp.eq.s32.totalorder %s29, 3
      %p128 = por %p126, %p127
      %p130 = scmp.ne.s32.totalorder %s113, %s129
      %p131 = scmp.eq.s32.totalorder %s29, 0
      %p132 = por %p130, %p131
      %s133 = smul.u32 %s30, 4
      %s134 = sadd.s32 %s133, %s31
      %s135 = smul.u32 %s42, 4
      %s136 = sadd.s32 %s135, %s38
      %s137 = ssub.s32 %s134, %s136
      %p138 = scmp.eq.s32.totalorder %s137, 0
      %s140 = sadd.s32 %s139, 1
      %s141 = scalar_select %p138, %s139, %s140
      %p144 = pneg %p138
      %p145 = scmp.eq.s32.totalorder %s23, 3
      %p146 = por %p144, %p145
      %p147 = scmp.ne.s32.totalorder %s139, %s142
      %p148 = scmp.eq.s32.totalorder %s23, 0
      %p149 = por %p147, %p148
      %p150 = scmp.ne.s32.totalorder %s139, %s142
      %p151 = scmp.eq.s32.totalorder %s28, 3
      %p152 = por %p150, %p151
      %p153 = scmp.ne.s32.totalorder %s142, %s143
      %p154 = scmp.eq.s32.totalorder %s28, 0
      %p155 = por %p153, %p154
      %p156 = scmp.ne.s32.totalorder %s142, %s143
      %p157 = scmp.eq.s32.totalorder %s29, 3
      %p158 = por %p156, %p157
      %p160 = scmp.ne.s32.totalorder %s143, %s159
      %p161 = scmp.eq.s32.totalorder %s29, 0
      %p162 = por %p160, %p161
      %s163 = smul.u32 %s30, 4
      %s164 = sadd.s32 %s163, %s31
      %s165 = smul.u32 %s42, 4
      %s166 = sadd.s32 %s165, %s38
      %s167 = ssub.s32 %s164, %s166
      %p168 = scmp.eq.s32.totalorder %s167, 0
      %s170 = sadd.s32 %s169, 1
      %s171 = scalar_select %p168, %s169, %s170
      %p174 = pneg %p168
      %p175 = scmp.eq.s32.totalorder %s23, 3
      %p176 = por %p174, %p175
      %p177 = scmp.ne.s32.totalorder %s169, %s172
      %p178 = scmp.eq.s32.totalorder %s23, 0
      %p179 = por %p177, %p178
      %p180 = scmp.ne.s32.totalorder %s169, %s172
      %p181 = scmp.eq.s32.totalorder %s28, 3
      %p182 = por %p180, %p181
      %p183 = scmp.ne.s32.totalorder %s172, %s173
      %p184 = scmp.eq.s32.totalorder %s28, 0
      %p185 = por %p183, %p184
      %p186 = scmp.ne.s32.totalorder %s172, %s173
      %p187 = scmp.eq.s32.totalorder %s29, 3
      %p188 = por %p186, %p187
      %p190 = scmp.ne.s32.totalorder %s173, %s189
      %p191 = scmp.eq.s32.totalorder %s29, 0
      %p192 = por %p190, %p191
      %s193 = ssub.s32 %s30, %s42
      %p194 = scmp.eq.s32.totalorder %s193, 0
      %s196 = sadd.s32 %s195, 1
      %s197 = scalar_select %p194, %s195, %s196
      %p200 = pneg %p194
      %p201 = scmp.eq.s32.totalorder %s23, 3
      %p202 = por %p200, %p201
      %p203 = scmp.ne.s32.totalorder %s195, %s198
      %p204 = scmp.eq.s32.totalorder %s23, 0
      %p205 = por %p203, %p204
      %p206 = scmp.ne.s32.totalorder %s195, %s198
      %p207 = scmp.eq.s32.totalorder %s28, 3
      %p208 = por %p206, %p207
      %p209 = scmp.ne.s32.totalorder %s198, %s199
      %p210 = scmp.eq.s32.totalorder %s28, 0
      %p211 = por %p209, %p210
      %p212 = scmp.ne.s32.totalorder %s198, %s199
      %p213 = scmp.eq.s32.totalorder %s29, 3
      %p214 = por %p212, %p213
      %p216 = scmp.ne.s32.totalorder %s199, %s215
      %p217 = scmp.eq.s32.totalorder %s29, 0
      %p218 = por %p216, %p217
      %s219 = ssub.s32 %s30, %s42
      %p220 = scmp.eq.s32.totalorder %s219, 0
      %s222 = sadd.s32 %s221, 1
      %s223 = scalar_select %p220, %s221, %s222
      %p226 = pneg %p220
      %p227 = scmp.eq.s32.totalorder %s23, 3
      %p228 = por %p226, %p227
      %p229 = scmp.ne.s32.totalorder %s221, %s224
      %p230 = scmp.eq.s32.totalorder %s23, 0
      %p231 = por %p229, %p230
      %p232 = scmp.ne.s32.totalorder %s221, %s224
      %p233 = scmp.eq.s32.totalorder %s28, 3
      %p234 = por %p232, %p233
      %p235 = scmp.ne.s32.totalorder %s224, %s225
      %p236 = scmp.eq.s32.totalorder %s28, 0
      %p237 = por %p235, %p236
      %p238 = scmp.ne.s32.totalorder %s224, %s225
      %p239 = scmp.eq.s32.totalorder %s29, 3
      %p240 = por %p238, %p239
      %p242 = scmp.ne.s32.totalorder %s225, %s241
      %p243 = scmp.eq.s32.totalorder %s29, 0
      %p244 = por %p242, %p243
      %p245 = scmp.le.s32.totalorder 1, %s23
      %p246 = scmp.lt.s32.totalorder %s23, 5
      %p247 = pnand %p245, %p246
      %p248 = pneg %p247
      // Predicated region
      $region9: #{tpu_custom_call.1} parent=5 // pred_check
        _
      $region10: #{tpu_custom_call.1} parent=5 // pred_check_branch
        %250 = sbr.rel (%p247) target = $region12
      $region11: #{tpu_custom_call.1} parent=5 // pred_region
        %s251 = ssub.s32 %s23, 1
      $region12: #{tpu_custom_call.1} parent=5 // pred_fallthru
        _
      %p252 = scmp.lt.s32.totalorder %s23, 4
      // Predicated region
      $region13: #{tpu_custom_call.1} parent=5 // pred_check
        %p253 = pneg %p252
      $region14: #{tpu_custom_call.1} parent=5 // pred_check_branch
        %255 = sbr.rel (%p253) target = $region16
      $region15: #{tpu_custom_call.1} parent=5 // pred_region
        // Predicated region
        $region17: #{tpu_custom_call.1} parent=15 // pred_check
          %p256 = pneg %p59
        $region18: #{tpu_custom_call.1} parent=15 // pred_check_branch
          %258 = sbr.rel (%p256) target = $region20
        $region19: #{tpu_custom_call.1} parent=15 // pred_region
          %s259 = sand.u32 %s49, 1
          %s260 = scalar_lea.sflag [#allocation3], %s259
          %s261 = sand.u32 %s49, 1
          %s262 = smul.addr %s261, 16
          %s263 = scalar_lea.vmem [#allocation2], %s262
          %s264 = smul.u32 %s30, 4
          %s265 = sadd.s32 %s264, %s31
          %s266 = smul.u32 2, %s265
          %s267 = ssub.s32 7, %s266
          %p268 = scmp.lt.s32.totalorder %s267, 2
          %s269 = scalar_select %p268, %s267, 2
          %s270 = smul.u32 128, %s269
          %s272 = ssub.s32 256, %s270
          %273 = vsyncadd %s260, %s272
          %p274 = scmp.ne.s32.totalorder 0, %s270
          %s275 = smul.addr %s266, 128
          %s276 = scalar_lea.hbm %s0, %s275
          %s277 = smul.u32 8, %s269
          %s278 = sshll.u32 %s263, 4
          %s279 = int_to_ptr.vmem [resolvable:$true] %s278
          %s280 = sshll.u32 %s277, 4
          %284 = dma.hbm_to_vmem [thread:$0]  (%p274), %s276, %s280, %s279, %s260, 128, 128, 8
        $region20: #{tpu_custom_call.1} parent=15 // pred_fallthru
          _
        // Predicated region
        $region21: #{tpu_custom_call.1} parent=15 // pred_check
          %p285 = pneg %p89
        $region22: #{tpu_custom_call.1} parent=15 // pred_check_branch
          %287 = sbr.rel (%p285) target = $region24
        $region23: #{tpu_custom_call.1} parent=15 // pred_region
          %s288 = sand.u32 %s23, 1
          %s289 = scalar_lea.sflag [#allocation6], %s288
          %s290 = sand.u32 %s79, 1
          %s291 = smul.addr %s290, 16
          %s292 = scalar_lea.vmem [#allocation5], %s291
          %s293 = smul.u32 %s30, 4
          %s294 = sadd.s32 %s293, %s31
          %s295 = smul.u32 2, %s294
          %s296 = ssub.s32 7, %s295
          %p297 = scmp.lt.s32.totalorder %s296, 2
          %s298 = scalar_select %p297, %s296, 2
          %s299 = smul.u32 128, %s298
          %s301 = ssub.s32 256, %s299
          %302 = vsyncadd %s289, %s301
          %p303 = scmp.ne.s32.totalorder 0, %s299
          %s304 = smul.addr %s295, 128
          %s305 = scalar_lea.hbm %s1, %s304
          %s306 = smul.u32 8, %s298
          %s307 = sshll.u32 %s292, 4
          %s308 = int_to_ptr.vmem [resolvable:$true] %s307
          %s309 = sshll.u32 %s306, 4
          %313 = dma.hbm_to_vmem [thread:$0]  (%p303), %s305, %s309, %s308, %s289, 128, 128, 8
        $region24: #{tpu_custom_call.1} parent=15 // pred_fallthru
          _
        // Predicated region
        $region25: #{tpu_custom_call.1} parent=15 // pred_check
          %p314 = pneg %p119
        $region26: #{tpu_custom_call.1} parent=15 // pred_check_branch
          %316 = sbr.rel (%p314) target = $region28
        $region27: #{tpu_custom_call.1} parent=15 // pred_region
          %s317 = sand.u32 %s23, 1
          %s318 = scalar_lea.sflag [#allocation6], %s317
          %s319 = sand.u32 %s109, 1
          %s320 = smul.addr %s319, 16
          %s321 = scalar_lea.vmem [#allocation7], %s320
          %s322 = smul.u32 %s30, 4
          %s323 = sadd.s32 %s322, %s31
          %s324 = smul.u32 2, %s323
          %s325 = ssub.s32 7, %s324
          %p326 = scmp.lt.s32.totalorder %s325, 2
          %s327 = scalar_select %p326, %s325, 2
          %s328 = smul.u32 128, %s327
          %s330 = ssub.s32 256, %s328
          %331 = vsyncadd %s318, %s330
          %p332 = scmp.ne.s32.totalorder 0, %s328
          %s333 = smul.addr %s324, 128
          %s334 = scalar_lea.hbm %s2, %s333
          %s335 = smul.u32 8, %s327
          %s336 = sshll.u32 %s321, 4
          %s337 = int_to_ptr.vmem [resolvable:$true] %s336
          %s338 = sshll.u32 %s335, 4
          %342 = dma.hbm_to_vmem [thread:$0]  (%p332), %s334, %s338, %s337, %s318, 128, 128, 8
        $region28: #{tpu_custom_call.1} parent=15 // pred_fallthru
          _
        // Predicated region
        $region29: #{tpu_custom_call.1} parent=15 // pred_check
          %p343 = pneg %p149
        $region30: #{tpu_custom_call.1} parent=15 // pred_check_branch
          %345 = sbr.rel (%p343) target = $region32
        $region31: #{tpu_custom_call.1} parent=15 // pred_region
          %s346 = sand.u32 %s23, 1
          %s347 = scalar_lea.sflag [#allocation9], %s346
          %s348 = sand.u32 %s139, 1
          %s349 = smul.addr %s348, 16
          %s350 = scalar_lea.vmem [#allocation8], %s349
          %s351 = smul.u32 %s30, 4
          %s352 = sadd.s32 %s351, %s31
          %s353 = smul.u32 2, %s352
          %s354 = ssub.s32 7, %s353
          %p355 = scmp.lt.s32.totalorder %s354, 2
          %s356 = scalar_select %p355, %s354, 2
          %s357 = smul.u32 128, %s356
          %s359 = ssub.s32 256, %s357
          %360 = vsyncadd %s347, %s359
          %p361 = scmp.ne.s32.totalorder 0, %s357
          %s362 = smul.addr %s353, 128
          %s363 = scalar_lea.hbm %s3, %s362
          %s364 = smul.u32 8, %s356
          %s365 = sshll.u32 %s350, 4
          %s366 = int_to_ptr.vmem [resolvable:$true] %s365
          %s367 = sshll.u32 %s364, 4
          %371 = dma.hbm_to_vmem [thread:$0]  (%p361), %s363, %s367, %s366, %s347, 128, 128, 8
        $region32: #{tpu_custom_call.1} parent=15 // pred_fallthru
          _
        // Predicated region
        $region33: #{tpu_custom_call.1} parent=15 // pred_check
          %p372 = pneg %p179
        $region34: #{tpu_custom_call.1} parent=15 // pred_check_branch
          %374 = sbr.rel (%p372) target = $region36
        $region35: #{tpu_custom_call.1} parent=15 // pred_region
          %s375 = sand.u32 %s23, 1
          %s376 = scalar_lea.sflag [#allocation9], %s375
          %s377 = sand.u32 %s169, 1
          %s378 = smul.addr %s377, 16
          %s379 = scalar_lea.vmem [#allocation10], %s378
          %s380 = smul.u32 %s30, 4
          %s381 = sadd.s32 %s380, %s31
          %s382 = smul.u32 2, %s381
          %s383 = ssub.s32 7, %s382
          %p384 = scmp.lt.s32.totalorder %s383, 2
          %s385 = scalar_select %p384, %s383, 2
          %s386 = smul.u32 128, %s385
          %s388 = ssub.s32 256, %s386
          %389 = vsyncadd %s376, %s388
          %p390 = scmp.ne.s32.totalorder 0, %s386
          %s391 = smul.addr %s382, 128
          %s392 = scalar_lea.hbm %s4, %s391
          %s393 = smul.u32 8, %s385
          %s394 = sshll.u32 %s379, 4
          %s395 = int_to_ptr.vmem [resolvable:$true] %s394
          %s396 = sshll.u32 %s393, 4
          %400 = dma.hbm_to_vmem [thread:$0]  (%p390), %s392, %s396, %s395, %s376, 128, 128, 8
        $region36: #{tpu_custom_call.1} parent=15 // pred_fallthru
          _
      $region16: #{tpu_custom_call.1} parent=5 // pred_fallthru
        _
      %p401 = scmp.le.s32.totalorder 1, %s23
      %p402 = scmp.lt.s32.totalorder %s23, 5
      %p403 = pnand %p401, %p402
      %p404 = pneg %p403
      // Predicated region
      $region37: #{tpu_custom_call.1} parent=5 // pred_check
        _
      $region38: #{tpu_custom_call.1} parent=5 // pred_check_branch
        %406 = sbr.rel (%p403) target = $region40
      $region39: #{tpu_custom_call.1} parent=5 // pred_region
        %s407 = ssub.s32 %s23, 1
        %s408 = sand.u32 %s52, 1
        %s409 = scalar_lea.sflag [#allocation3], %s408
        %s410 = sand.u32 %s52, 1
        %s411 = smul.addr %s410, 16
        %s412 = scalar_lea.vmem [#allocation2], %s411
        // Predicated region
        $region41: #{tpu_custom_call.1} parent=39 // pred_check
          %p413 = pneg %p65
        $region42: #{tpu_custom_call.1} parent=39 // pred_check_branch
          %415 = sbr.rel (%p413) target = $region44
        $region43: #{tpu_custom_call.1} parent=39 // pred_region
          %416 = dma.done %s409, 256
        $region44: #{tpu_custom_call.1} parent=39 // pred_fallthru
          _
        %s417 = sand.u32 %s28, 1
        %s418 = scalar_lea.sflag [#allocation6], %s417
        %s419 = sand.u32 %s82, 1
        %s420 = smul.addr %s419, 16
        %s421 = scalar_lea.vmem [#allocation5], %s420
        // Predicated region
        $region45: #{tpu_custom_call.1} parent=39 // pred_check
          %p422 = pneg %p95
        $region46: #{tpu_custom_call.1} parent=39 // pred_check_branch
          %424 = sbr.rel (%p422) target = $region48
        $region47: #{tpu_custom_call.1} parent=39 // pred_region
          %425 = dma.done %s418, 256
        $region48: #{tpu_custom_call.1} parent=39 // pred_fallthru
          _
        %s426 = sand.u32 %s28, 1
        %s427 = scalar_lea.sflag [#allocation6], %s426
        %s428 = sand.u32 %s112, 1
        %s429 = smul.addr %s428, 16
        %s430 = scalar_lea.vmem [#allocation7], %s429
        // Predicated region
        $region49: #{tpu_custom_call.1} parent=39 // pred_check
          %p431 = pneg %p125
        $region50: #{tpu_custom_call.1} parent=39 // pred_check_branch
          %433 = sbr.rel (%p431) target = $region52
        $region51: #{tpu_custom_call.1} parent=39 // pred_region
          %434 = dma.done %s427, 256
        $region52: #{tpu_custom_call.1} parent=39 // pred_fallthru
          _
        %s435 = sand.u32 %s28, 1
        %s436 = scalar_lea.sflag [#allocation9], %s435
        %s437 = sand.u32 %s142, 1
        %s438 = smul.addr %s437, 16
        %s439 = scalar_lea.vmem [#allocation8], %s438
        // Predicated region
        $region53: #{tpu_custom_call.1} parent=39 // pred_check
          %p440 = pneg %p155
        $region54: #{tpu_custom_call.1} parent=39 // pred_check_branch
          %442 = sbr.rel (%p440) target = $region56
        $region55: #{tpu_custom_call.1} parent=39 // pred_region
          %443 = dma.done %s436, 256
        $region56: #{tpu_custom_call.1} parent=39 // pred_fallthru
          _
        %s444 = sand.u32 %s28, 1
        %s445 = scalar_lea.sflag [#allocation9], %s444
        %s446 = sand.u32 %s172, 1
        %s447 = smul.addr %s446, 16
        %s448 = scalar_lea.vmem [#allocation10], %s447
        // Predicated region
        $region57: #{tpu_custom_call.1} parent=39 // pred_check
          %p449 = pneg %p185
        $region58: #{tpu_custom_call.1} parent=39 // pred_check_branch
          %451 = sbr.rel (%p449) target = $region60
        $region59: #{tpu_custom_call.1} parent=39 // pred_region
          %452 = dma.done %s445, 256
        $region60: #{tpu_custom_call.1} parent=39 // pred_fallthru
          _
        %s453 = sand.u32 %s52, 1
        %s454 = scalar_lea.sflag [#allocation3], %s453
        %s455 = sand.u32 %s52, 1
        %s456 = smul.addr %s455, 16
        %s457 = scalar_lea.vmem [#allocation2], %s456
        %p458 = pneg %p65
        %p459 = pneg %p62
        %s460 = sand.u32 %s28, 1
        %s461 = scalar_lea.sflag [#allocation6], %s460
        %s462 = sand.u32 %s82, 1
        %s463 = smul.addr %s462, 16
        %s464 = scalar_lea.vmem [#allocation5], %s463
        %p465 = pneg %p95
        %p466 = pneg %p92
        %s467 = sand.u32 %s28, 1
        %s468 = scalar_lea.sflag [#allocation6], %s467
        %s469 = sand.u32 %s112, 1
        %s470 = smul.addr %s469, 16
        %s471 = scalar_lea.vmem [#allocation7], %s470
        %p472 = pneg %p125
        %p473 = pneg %p122
        %s474 = sand.u32 %s28, 1
        %s475 = scalar_lea.sflag [#allocation9], %s474
        %s476 = sand.u32 %s142, 1
        %s477 = smul.addr %s476, 16
        %s478 = scalar_lea.vmem [#allocation8], %s477
        %p479 = pneg %p155
        %p480 = pneg %p152
        %s481 = sand.u32 %s28, 1
        %s482 = scalar_lea.sflag [#allocation9], %s481
        %s483 = sand.u32 %s172, 1
        %s484 = smul.addr %s483, 16
        %s485 = scalar_lea.vmem [#allocation10], %s484
        %p486 = pneg %p185
        %p487 = pneg %p182
        %p488 = pneg %p211
        %p489 = pneg %p208
        %p490 = pneg %p237
        %p491 = pneg %p234
        %p492 = scmp.lt.s32.totalorder %s32, 0
        %s493 = scalar_select %p492, %s32, 0
        %s494 = smul.addr %s493, 8
        %s495 = scalar_lea.vmem %s6, %s494
        %s496 = smul.u32 %s32, 4
        %s497 = sadd.s32 %s496, %s33
        %s498 = smul.u32 2, %s497
        %s499 = ssub.s32 7, %s498
        %p500 = scmp.lt.s32.totalorder %s499, 2
        %s501 = scalar_select %p500, %s499, 2
        %s502 = smul.u32 128, %s501
        %s503 = smul.u32 %s32, 4
        %s504 = sadd.s32 %s503, %s33
        %s505 = smul.u32 2, %s504
        %s506 = ssub.s32 7, %s505
        %p507 = scmp.lt.s32.totalorder %s506, 2
        %s508 = scalar_select %p507, %s506, 2
        %s509 = smul.u32 128, %s508
        %s510 = smul.u32 %s32, 4
        %s511 = sadd.s32 %s510, %s33
        %s512 = smul.u32 2, %s511
        %s513 = ssub.s32 7, %s512
        %p514 = scmp.lt.s32.totalorder %s513, 2
        %s515 = scalar_select %p514, %s513, 2
        %s516 = smul.u32 128, %s515
        %s517 = smul.u32 %s32, 4
        %s518 = sadd.s32 %s517, %s33
        %s519 = smul.u32 2, %s518
        %s520 = ssub.s32 7, %s519
        %p521 = scmp.lt.s32.totalorder %s520, 2
        %s522 = scalar_select %p521, %s520, 2
        %s523 = smul.u32 128, %s522
        %s524 = smul.u32 %s32, 4
        %s525 = sadd.s32 %s524, %s33
        %s526 = smul.u32 2, %s525
        %s527 = ssub.s32 7, %s526
        %p528 = scmp.lt.s32.totalorder %s527, 2
        %s529 = scalar_select %p528, %s527, 2
        %s530 = smul.u32 128, %s529
        %p531 = scmp.lt.s32.totalorder %s32, 0
        %s532 = scalar_select %p531, %s32, 0
        %s533 = smul.addr %s532, 8
        %s534 = scalar_lea.vmem %s6, %s533
        %p535 = scmp.eq.s32.totalorder %s33, 0
        // Predicated region
        $region61: #{tpu_custom_call.1} parent=39 // pred_check
          %p536 = pneg %p535
        $region62: #{tpu_custom_call.1} parent=39 // pred_check_branch
          %538 = sbr.rel (%p536) target = $region64
        $region63: #{tpu_custom_call.1} parent=39 // pred_region
          %539 = vst [vmem:[#allocation11] sm:$0xff] 0.0
          %vm540 = vcmask 7168
          %541 = vst.msk [vmem:[%s534] sm:$0xff] %vm540, 0.0
        $region64: #{tpu_custom_call.1} parent=39 // pred_fallthru
          _
        %s542 = smul.u32 %s32, 4
        %s543 = sadd.s32 %s542, %s33
        %s544 = smul.u32 %s543, 16
        %v545 = vlaneseq
        %v546 = vshrl.u32 %v545, 7
        %v547 = vadd.s32 %v546, 8
        %v548 = vstv %s544
        %v549 = vadd.s32 %v548, %v546
        %v550 = vadd.s32 %v548, %v547
        %vm551 = vcmp.lt.s32.totalorder %v549, 56
        %vm552 = vcmp.lt.s32.totalorder %v550, 56
        %v553 = vld [vmem:[%s412] sm:$0xff]
        %v554 = vld [vmem:[%s412 + $0x8] sm:$0xff]
        %v555 = vld [vmem:[%s421] sm:$0xff]
        %v556 = vld [vmem:[%s421 + $0x8] sm:$0xff]
        %v557 = vlog2.pop %v553
        %v558 = vmul.f32 %v557, 0.6931472
        %v559 = vlog2.pop %v554
        %v560 = vmul.f32 %v559, 0.6931472
        %v561 = vmax.f32 %v558, -100.0
        %v562 = vmax.f32 %v560, -100.0
        %v563 = vsub.f32 1.0, %v553
        %v564 = vsub.f32 1.0, %v554
        %v565 = vlog2.pop %v563
        %v566 = vmul.f32 %v565, 0.6931472
        %v567 = vlog2.pop %v564
        %v568 = vmul.f32 %v567, 0.6931472
        %v569 = vmax.f32 %v566, -100.0
        %v570 = vmax.f32 %v568, -100.0
        %v571 = vsub.f32 %v561, %v569
        %v572 = vsub.f32 %v562, %v570
        %v573 = vmul.f32 %v555, %v571
        %v574 = vmul.f32 %v556, %v572
        %v575 = vadd.f32 %v569, %v573
        %v576 = vadd.f32 %v570, %v574
        %v577 = vld [vmem:[%s430] sm:$0xff]
        %v578 = vld [vmem:[%s430 + $0x8] sm:$0xff]
        %v579 = vld [vmem:[%s439] sm:$0xff]
        %v580 = vld [vmem:[%s439 + $0x8] sm:$0xff]
        %v581 = vlog2.pop %v577
        %v582 = vmul.f32 %v581, 0.6931472
        %v583 = vlog2.pop %v578
        %v584 = vmul.f32 %v583, 0.6931472
        %v585 = vmax.f32 %v582, -100.0
        %v586 = vmax.f32 %v584, -100.0
        %v587 = vsub.f32 1.0, %v577
        %v588 = vsub.f32 1.0, %v578
        %v589 = vlog2.pop %v587
        %v590 = vmul.f32 %v589, 0.6931472
        %v591 = vlog2.pop %v588
        %v592 = vmul.f32 %v591, 0.6931472
        %v593 = vmax.f32 %v590, -100.0
        %v594 = vmax.f32 %v592, -100.0
        %v595 = vsub.f32 %v585, %v593
        %v596 = vsub.f32 %v586, %v594
        %v597 = vmul.f32 %v579, %v595
        %v598 = vmul.f32 %v580, %v596
        %v599 = vadd.f32 %v593, %v597
        %v600 = vadd.f32 %v594, %v598
        %v601 = vadd.f32 %v575, %v599
        %v602 = vadd.f32 %v576, %v600
        %v603 = vsel %vm551, 1, 0
        %v604 = vsel %vm552, 1, 0
        %vm605 = vcmp.eq.s32.totalorder %v603, 1
        %vm606 = vcmp.eq.s32.totalorder %v604, 1
        %v607 = vsel %vm605, %v601, 0.0
        %v608 = vsel %vm606, %v602, 0.0
        %v609 = vld [vmem:[#allocation11] sm:$0xff]
        %v610 = vadd.f32 %v607, %v608
        %v611 = vsub.f32 %v609, %v610
        %612 = vst [vmem:[#allocation11] sm:$0xff] %v611
        %v613 = vld [vmem:[%s448] sm:$0xff]
        %v614 = vld [vmem:[%s448 + $0x8] sm:$0xff]
        %617 = vrot.lane.b32.xlu0 %v613, 112
        %v618 = vpop.permute.xlu0 %617
        %619 = vrot.lane.b32.xlu0 %v614, 112
        %v620 = vpop.permute.xlu0 %619
        %v623 = vsub.f32 %v613, %v618
        %v624 = vsub.f32 %v614, %v620
        %v625 = vadd.f32 %v623, 1e-06
        %v626 = vadd.f32 %v624, 1e-06
        %v627 = vmul.f32 %v625, %v625
        %v628 = vmul.f32 %v626, %v626
        %vm629 = vcmask 130048
        %v630 = vsel %vm629, %v627, 0.0
        %631 = vadd.xlane.f32.xlu0 %v630
        %v632 = vpop.xlane.xlu0 %631
        %v633 = vsel %vm629, %v628, 0.0
        %634 = vadd.xlane.f32.xlu0 %v633
        %v635 = vpop.xlane.xlu0 %634
        %v636 = vrsqrt.pop %v632
        %v637 = vmul.f32 %v632, %v636
        %vm638 = vcmp.eq.f32.partialorder %v632, inf
        %v639 = vsel %vm638, %v632, %v637
        %vm640 = vcmp.eq.f32.partialorder %v632, 0.0
        %v641 = vand.u32 %v632, 2147483648
        %v642 = vsel %vm640, %v641, %v639
        %v643 = vrsqrt.pop %v635
        %v644 = vmul.f32 %v635, %v643
        %vm645 = vcmp.eq.f32.partialorder %v635, inf
        %v646 = vsel %vm645, %v635, %v644
        %vm647 = vcmp.eq.f32.partialorder %v635, 0.0
        %v648 = vand.u32 %v635, 2147483648
        %v649 = vsel %vm647, %v648, %v646
        %v650 = vsub.f32 1.0, %v642
        %v651 = vsub.f32 1.0, %v649
        %v652 = vmax.f32 %v650, 0.0
        %v653 = vmax.f32 %v651, 0.0
        %v654 = vmul.f32 %v613, %v632
        %v655 = vmul.f32 %v614, %v635
        %v656 = vsub.f32 1.0, %v613
        %v657 = vsub.f32 1.0, %v614
        %v658 = vmul.f32 %v652, %v652
        %v659 = vmul.f32 %v653, %v653
        %v660 = vmul.f32 %v656, %v658
        %v661 = vmul.f32 %v657, %v659
        %v662 = vadd.f32 %v654, %v660
        %v663 = vadd.f32 %v655, %v661
        %v664 = vsel %vm551, %v662, 0.0
        %v665 = vsel %vm552, %v663, 0.0
        %v666 = vld [vmem:[%s534] sm:$0xff]
        %vm667 = vcmask 269568
        %v668 = vsel %vm667, %v664, 0.0
        %v669 = vsel %vm667, %v665, 0.0
        %v670 = vadd.f32 %v668, %v669
        %672 = vrot.lane.b32.xlu0 %v670, 96
        %v673 = vpop.permute.xlu0 %672
        %v675 = vadd.f32 %v666, %v673
        %vm676 = vcmask 7168
        %677 = vst.msk [vmem:[%s534] sm:$0xff] %vm676, %v675
        %p678 = scmp.lt.s32.totalorder %s32, 0
        %s679 = scalar_select %p678, %s32, 0
        %s680 = smul.addr %s679, 8
        %s681 = scalar_lea.vmem %s6, %s680
        // Predicated region
        $region65: #{tpu_custom_call.1} parent=39 // pred_check
          %p682 = pneg %p208
        $region66: #{tpu_custom_call.1} parent=39 // pred_check_branch
          %684 = sbr.rel (%p682) target = $region68
        $region67: #{tpu_custom_call.1} parent=39 // pred_region
          %s686 = ssub.s32 128, 128
          %687 = vsyncadd [#allocation4], %s686
          %s688 = smul.addr %s32, 128
          %s689 = scalar_lea.hbm %s5, %s688
          %s691 = sshll.u32 [#allocation11], 4
          %s692 = int_to_ptr.vmem [resolvable:$true] %s691
          %694 = dma.vmem_to_hbm [thread:$0]  %s692, 128, %s689, [#allocation4]
        $region68: #{tpu_custom_call.1} parent=39 // pred_fallthru
          _
        // Predicated region
        $region69: #{tpu_custom_call.1} parent=39 // pred_check
          %p695 = pneg %p234
        $region70: #{tpu_custom_call.1} parent=39 // pred_check_branch
          %697 = sbr.rel (%p695) target = $region72
        $region71: #{tpu_custom_call.1} parent=39 // pred_region
          _
        $region72: #{tpu_custom_call.1} parent=39 // pred_fallthru
          _
        // Predicated region
        $region73: #{tpu_custom_call.1} parent=39 // pred_check
          %p698 = pneg %p208
        $region74: #{tpu_custom_call.1} parent=39 // pred_check_branch
          %700 = sbr.rel (%p698) target = $region76
        $region75: #{tpu_custom_call.1} parent=39 // pred_region
          %701 = dma.done [#allocation4], 128
        $region76: #{tpu_custom_call.1} parent=39 // pred_fallthru
          _
        // Predicated region
        $region77: #{tpu_custom_call.1} parent=39 // pred_check
          %p702 = pneg %p234
        $region78: #{tpu_custom_call.1} parent=39 // pred_check_branch
          %704 = sbr.rel (%p702) target = $region80
        $region79: #{tpu_custom_call.1} parent=39 // pred_region
          %p705 = scmp.lt.s32.totalorder %s32, 0
          %s706 = scalar_select %p705, %s32, 0
          %s707 = smul.addr %s706, 8
          %s708 = scalar_lea.vmem %s6, %s707
        $region80: #{tpu_custom_call.1} parent=39 // pred_fallthru
          _
      $region40: #{tpu_custom_call.1} parent=5 // pred_fallthru
        _
      %p709 = scmp.le.s32.totalorder 2, %s23
      // Predicated region
      $region81: #{tpu_custom_call.1} parent=5 // pred_check
        %p710 = pneg %p709
      $region82: #{tpu_custom_call.1} parent=5 // pred_check_branch
        %712 = sbr.rel (%p710) target = $region84
      $region83: #{tpu_custom_call.1} parent=5 // pred_region
        %s713 = ssub.s32 %s23, 2
      $region84: #{tpu_custom_call.1} parent=5 // pred_fallthru
        _
    $region6: #{tpu_custom_call.1} parent=1 // loop_footer
      %s27 = sadd.s32 1, %s23
    $region7: #{tpu_custom_call.1} parent=1 // loop_footer_branch
      %22 = sbr.rel target = $region3
    $region8: #{tpu_custom_call.1} parent=1 // loop_exit
      _
    %714 = vsyncpa [#allocation3], 1
    %s715 = scalar_lea.sflag [#allocation3], 1
    %716 = vsyncpa %s715, 1
    %717 = vsyncpa [#allocation6], 1
    %s718 = scalar_lea.sflag [#allocation6], 1
    %719 = vsyncpa %s718, 1
    %720 = vsyncpa [#allocation9], 1
    %s721 = scalar_lea.sflag [#allocation9], 1
    %722 = vsyncpa %s721, 1
    %723 = vsyncpa [#allocation4], 1
    %s724 = scalar_lea.sflag [#allocation4], 1
    %725 = vsyncpa %s724, 1

</llo_original>
